<compile_context>
chip_gen: v7x
topology: tpu7x:2x2x1
jax: 0.10.0
libtpu: 0.0.40
codegen_flags: <defaults>
</compile_context>

<pallas_src>
import numpy as np
import jax
import jax.numpy as jnp
from jax.experimental import pallas as pl
from jax.experimental.pallas import tpu as pltpu


def _round_up(x, m):
    return ((x + m - 1) // m) * m


def _choose_tile(batch):
    """Batch-tile size: big tiles amortize the ~0.35us/step pipeline overhead,
    but keep >= 2 grid steps when the batch allows it so v7x's 2 TensorCores
    both get work under dimension_semantics=("parallel",)."""
    if batch <= 8:
        return 8
    half = (batch + 1) // 2
    return min(1024, _round_up(half, 8))


def mlpbase_kernel(x_ref, w1_ref, w2_ref, p_ref, actor_ref, value_ref):
    """Fused actor+critic forward on one batch tile.

    x_ref:     (TB, num_inputs)  bf16
    w1_ref:    (num_inputs, 2H)  bf16, [actor | critic] layer-1 weights (already W.T)
    w2_ref:    (2H, 2H)          bf16, block-diag: [[aw2, 0], [0, cw2]]
    p_ref:     (4, 2H)           f32 rows: b1, b2, clw_pad (zeros|clw), clb (replicated)
    actor_ref: (TB, H)           f32 hidden_actor
    value_ref: (TB, 1)           f32 value
    """
    H2 = w2_ref.shape[1]
    H = H2 // 2

    b1 = p_ref[0:1, :]
    b2 = p_ref[1:2, :]
    clw_pad = p_ref[2:3, :]
    clb = p_ref[3:4, 0:1]

    # Layer 1 (both branches in one MXU push): (TB, in) @ (in, 2H), f32 accumulation.
    h1 = jnp.dot(x_ref[...], w1_ref[...], preferred_element_type=jnp.float32) + b1
    h1 = jnp.maximum(h1, 0.0)

    # Layer 2 (block-diagonal, both branches in one MXU push): (TB, 2H) @ (2H, 2H).
    h2 = jnp.dot(h1.astype(w2_ref.dtype), w2_ref[...],
                 preferred_element_type=jnp.float32) + b2
    h2 = jnp.maximum(h2, 0.0)

    # critic_linear as a lane reduction (VPU/XLU) instead of an N=1 matmul.
    # clw_pad is zero over the actor half, so the full-width reduce only picks
    # up the critic hidden units.
    value_ref[...] = jnp.sum(h2 * clw_pad, axis=-1, keepdims=True) + clb

    # Actor hidden lives in the first H lanes of the fused slab.
    actor_ref[...] = h2[:, :H]


def pack_params(p):
    """Pack per-layer parameters into 3 arrays (done once, outside the kernel).

    Weights are cast to bf16 for the MXU; biases / critic row stay f32.
    """
    H = p["aw1"].shape[1]
    w1 = jnp.concatenate([p["aw1"], p["cw1"]], axis=1).astype(jnp.bfloat16)   # (in, 2H)
    w2 = jnp.zeros((2 * H, 2 * H), jnp.float32)
    w2 = w2.at[:H, :H].set(p["aw2"]).at[H:, H:].set(p["cw2"])                 # block-diag
    w2 = w2.astype(jnp.bfloat16)
    b1 = jnp.concatenate([p["ab1"], p["cb1"]], axis=1)                        # (1, 2H)
    b2 = jnp.concatenate([p["ab2"], p["cb2"]], axis=1)                        # (1, 2H)
    clw_pad = jnp.concatenate([jnp.zeros((1, H), jnp.float32), p["clw"].T], axis=1)
    clb_row = jnp.full((1, 2 * H), p["clb"][0, 0], jnp.float32)
    pk = jnp.concatenate([b1, b2, clw_pad, clb_row], axis=0)                  # (4, 2H) f32
    return w1, w2, pk


def mlpbase_forward(x, packed):
    """Fused MLPBase forward. Returns (value, hidden_actor, rnn_hxs=None)."""
    w1, w2, pk = packed
    B, num_inputs = x.shape
    H2 = w1.shape[1]
    H = H2 // 2

    TB = _choose_tile(B)
    num_tiles = pl.cdiv(B, TB)

    # bf16 at the wrapper boundary (halves x DMA bytes); accumulation stays f32.
    x = x.astype(jnp.bfloat16)

    actor, value = pl.pallas_call(
        mlpbase_kernel,
        grid=(num_tiles,),
        in_specs=[
            pl.BlockSpec((TB, num_inputs), lambda i: (i, 0)),   # x: blocked on rows
            pl.BlockSpec((num_inputs, H2), lambda i: (0, 0)),   # w1: resident
            pl.BlockSpec((H2, H2), lambda i: (0, 0)),           # w2: resident
            pl.BlockSpec((4, H2), lambda i: (0, 0)),            # bias/clw pack: resident
        ],
        out_specs=[
            pl.BlockSpec((TB, H), lambda i: (i, 0)),            # hidden_actor
            pl.BlockSpec((TB, 1), lambda i: (i, 0)),            # value
        ],
        out_shape=[
            jax.ShapeDtypeStruct((B, H), jnp.float32),
            jax.ShapeDtypeStruct((B, 1), jnp.float32),
        ],
        compiler_params=pltpu.CompilerParams(
            dimension_semantics=("parallel",)),
    )(x, w1, w2, pk)

    return value, actor, None


def init_params(key, num_inputs, hidden_size):
    """Matches MLPBase.__init__: orthogonal(gain=sqrt(2)) weights, zero biases."""
    ortho = jax.nn.initializers.orthogonal(scale=np.sqrt(2.0))
    keys = jax.random.split(key, 5)
    # PyTorch Linear weight is (out, in); init orthogonal there, then transpose to (in, out).
    aw1 = ortho(keys[0], (hidden_size, num_inputs), jnp.float32).T
    aw2 = ortho(keys[1], (hidden_size, hidden_size), jnp.float32).T
    cw1 = ortho(keys[2], (hidden_size, num_inputs), jnp.float32).T
    cw2 = ortho(keys[3], (hidden_size, hidden_size), jnp.float32).T
    clw = ortho(keys[4], (1, hidden_size), jnp.float32).T
    return {
        "aw1": aw1, "ab1": jnp.zeros((1, hidden_size), jnp.float32),
        "aw2": aw2, "ab2": jnp.zeros((1, hidden_size), jnp.float32),
        "cw1": cw1, "cb1": jnp.zeros((1, hidden_size), jnp.float32),
        "cw2": cw2, "cb2": jnp.zeros((1, hidden_size), jnp.float32),
        "clw": clw, "clb": jnp.zeros((1, 1), jnp.float32),
    }


def reference_forward(x, p, mirror_bf16=True):
    """Numpy reference of the module forward.

    mirror_bf16=True reproduces the kernel's precision policy (bf16 matmul
    inputs, f32 accumulation / epilogue) so a tight tolerance can be used;
    mirror_bf16=False is the pure-f32 module semantics.
    """
    if mirror_bf16:
        def cvt(a):
            return np.asarray(jnp.asarray(a, jnp.float32)
                              .astype(jnp.bfloat16).astype(jnp.float32))
    else:
        def cvt(a):
            return np.asarray(jnp.asarray(a, jnp.float32))

    xn = cvt(x)
    # critic branch
    hc = np.maximum(xn @ cvt(p["cw1"]) + np.asarray(p["cb1"]), 0.0)
    hc = np.maximum(cvt(hc) @ cvt(p["cw2"]) + np.asarray(p["cb2"]), 0.0)
    value = hc @ np.asarray(p["clw"]) + np.asarray(p["clb"])
    # actor branch
    ha = np.maximum(xn @ cvt(p["aw1"]) + np.asarray(p["ab1"]), 0.0)
    ha = np.maximum(cvt(ha) @ cvt(p["aw2"]) + np.asarray(p["ab2"]), 0.0)
    return value, ha


def _check(x, params, packed, hidden_size):
    value, hidden_actor, rnn_hxs = mlpbase_forward(x, packed)
    value = jax.block_until_ready(value)
    hidden_actor = jax.block_until_ready(hidden_actor)

    B = x.shape[0]
    assert value.shape == (B, 1)
    assert hidden_actor.shape == (B, hidden_size)
    assert rnn_hxs is None

    # Tight check vs a precision-mirrored reference (bf16 matmul inputs, f32 acc).
    v_ref, a_ref = reference_forward(x, params, mirror_bf16=True)
    np.testing.assert_allclose(np.asarray(value), v_ref, rtol=5e-3, atol=5e-3)
    np.testing.assert_allclose(np.asarray(hidden_actor), a_ref, rtol=5e-3, atol=5e-3)

    # Loose check vs the pure-f32 module semantics (bounds bf16 rounding error).
    v32, a32 = reference_forward(x, params, mirror_bf16=False)
    np.testing.assert_allclose(np.asarray(value), v32, rtol=3e-2, atol=3e-2)
    np.testing.assert_allclose(np.asarray(hidden_actor), a32, rtol=3e-2, atol=3e-2)


if __name__ == "__main__":
    num_inputs = 16
    hidden_size = 64   # MLPBase default -> fused width 2H = 128 (lane-dense)

    key = jax.random.PRNGKey(0)
    k_x, k_x2, k_p = jax.random.split(key, 3)
    params = init_params(k_p, num_inputs, hidden_size)
    packed = pack_params(params)   # packing + bf16 cast done once, outside the kernel

    # Small batch: single (partial) grid step.
    x_small = jax.random.normal(k_x, (4, num_inputs), dtype=jnp.float32)
    _check(x_small, params, packed, hidden_size)

    # Non-multiple-of-tile batch: exercises the 2-step grid with a masked
    # partial last block (the path that replaced the wrapper-side jnp.pad).
    x_big = jax.random.normal(k_x2, (20, num_inputs), dtype=jnp.float32)
    _check(x_big, params, packed, hidden_size)

    print("KERNEL_OK")
</pallas_src>

<mosaic_0001>
module attributes {stable_mosaic.version = 11 : i64} {
  func.func @mlpbase_kernel(%arg0: i32, %arg1: memref<8x16xbf16, #tpu.memory_space<vmem>>, %arg2: memref<16x128xbf16, #tpu.memory_space<vmem>>, %arg3: memref<128x128xbf16, #tpu.memory_space<vmem>>, %arg4: memref<4x128xf32, #tpu.memory_space<vmem>>, %arg5: memref<8x64xf32, #tpu.memory_space<vmem>>, %arg6: memref<8x1xf32, #tpu.memory_space<vmem>>) attributes {dimension_semantics = [#tpu.dimension_semantics<parallel>], iteration_bounds = array<i64: 1>, scalar_prefetch = 0 : i64, scratch_operands = 0 : i64, tpu.core_type = #tpu.core_type<tc>, window_params = [{transform_indices = @transform_0, window_bounds = array<i64: 8, 16>}, {pipeline_mode = #tpu.pipeline_mode<synchronous>, transform_indices = @transform_1, window_bounds = array<i64: 16, 128>}, {pipeline_mode = #tpu.pipeline_mode<synchronous>, transform_indices = @transform_2, window_bounds = array<i64: 128, 128>}, {pipeline_mode = #tpu.pipeline_mode<synchronous>, transform_indices = @transform_3, window_bounds = array<i64: 4, 128>}, {transform_indices = @transform_4, window_bounds = array<i64: 8, 64>}, {transform_indices = @transform_5, window_bounds = array<i64: 8, 1>}]} {
    %c0 = arith.constant 0 : index
    %c0_0 = arith.constant 0 : index
    %0 = vector.load %arg4[%c0, %c0_0] : memref<4x128xf32, #tpu.memory_space<vmem>>, vector<1x128xf32>
    %c1 = arith.constant 1 : index
    %c0_1 = arith.constant 0 : index
    %1 = vector.load %arg4[%c1, %c0_1] : memref<4x128xf32, #tpu.memory_space<vmem>>, vector<1x128xf32>
    %c2 = arith.constant 2 : index
    %c0_2 = arith.constant 0 : index
    %2 = vector.load %arg4[%c2, %c0_2] : memref<4x128xf32, #tpu.memory_space<vmem>>, vector<1x128xf32>
    %c3 = arith.constant 3 : index
    %c0_3 = arith.constant 0 : index
    %3 = vector.load %arg4[%c3, %c0_3] : memref<4x128xf32, #tpu.memory_space<vmem>>, vector<1x1xf32>
    %c0_4 = arith.constant 0 : index
    %c0_5 = arith.constant 0 : index
    %4 = vector.load %arg1[%c0_4, %c0_5] : memref<8x16xbf16, #tpu.memory_space<vmem>>, vector<8x16xbf16>
    %c0_6 = arith.constant 0 : index
    %c0_7 = arith.constant 0 : index
    %5 = vector.load %arg2[%c0_6, %c0_7] : memref<16x128xbf16, #tpu.memory_space<vmem>>, vector<16x128xbf16>
    %cst = arith.constant dense<0.000000e+00> : vector<8x128xf32>
    %6 = tpu.matmul %4, %5, %cst {dimension_numbers = #tpu.dot_dimension_numbers<[1], [0], [0], [1], [0, 0, 1, 1], [], []>} : vector<8x16xbf16>, vector<16x128xbf16>, vector<8x128xf32> -> vector<8x128xf32>
    %7 = vector.broadcast %0 : vector<1x128xf32> to vector<8x128xf32>
    %8 = arith.addf %6, %7 : vector<8x128xf32>
    %cst_8 = arith.constant 0.000000e+00 : f32
    %9 = vector.broadcast %cst_8 : f32 to vector<8x128xf32>
    %10 = arith.maximumf %8, %9 : vector<8x128xf32>
    %11 = arith.truncf %10 : vector<8x128xf32> to vector<8x128xbf16>
    %c0_9 = arith.constant 0 : index
    %c0_10 = arith.constant 0 : index
    %12 = vector.load %arg3[%c0_9, %c0_10] : memref<128x128xbf16, #tpu.memory_space<vmem>>, vector<128x128xbf16>
    %cst_11 = arith.constant dense<0.000000e+00> : vector<8x128xf32>
    %13 = tpu.matmul %11, %12, %cst_11 {dimension_numbers = #tpu.dot_dimension_numbers<[1], [0], [0], [1], [0, 0, 1, 1], [], []>} : vector<8x128xbf16>, vector<128x128xbf16>, vector<8x128xf32> -> vector<8x128xf32>
    %14 = vector.broadcast %1 : vector<1x128xf32> to vector<8x128xf32>
    %15 = arith.addf %13, %14 : vector<8x128xf32>
    %cst_12 = arith.constant 0.000000e+00 : f32
    %16 = vector.broadcast %cst_12 : f32 to vector<8x128xf32>
    %17 = arith.maximumf %15, %16 : vector<8x128xf32>
    %18 = vector.broadcast %2 : vector<1x128xf32> to vector<8x128xf32>
    %19 = arith.mulf %17, %18 : vector<8x128xf32>
    %cst_13 = arith.constant dense<0.000000e+00> : vector<8xf32>
    %20 = vector.multi_reduction <add>, %19, %cst_13 [1] : vector<8x128xf32> to vector<8xf32>
    %21 = vector.shape_cast %20 : vector<8xf32> to vector<8x1xf32>
    %22 = vector.broadcast %3 : vector<1x1xf32> to vector<8x1xf32>
    %23 = arith.addf %21, %22 : vector<8x1xf32>
    %c0_14 = arith.constant 0 : index
    %c0_15 = arith.constant 0 : index
    %24 = vector.load %arg6[%c0_14, %c0_15] : memref<8x1xf32, #tpu.memory_space<vmem>>, vector<8x1xf32>
    tpu.vector_store %arg6[%c0_14, %c0_15], %23 {strides = array<i32>} : memref<8x1xf32, #tpu.memory_space<vmem>>, vector<8x1xf32>,
    %25 = vector.extract_strided_slice %17 {offsets = [0, 0], sizes = [8, 64], strides = [1, 1]} : vector<8x128xf32> to vector<8x64xf32>
    %c0_16 = arith.constant 0 : index
    %c0_17 = arith.constant 0 : index
    %26 = vector.load %arg5[%c0_16, %c0_17] : memref<8x64xf32, #tpu.memory_space<vmem>>, vector<8x64xf32>
    tpu.vector_store %arg5[%c0_16, %c0_17], %25 {strides = array<i32>} : memref<8x64xf32, #tpu.memory_space<vmem>>, vector<8x64xf32>,
    return
  }
  func.func @transform_0(%arg0: i32) -> (i32, i32) {
    %c0_i32 = arith.constant 0 : i32
    %c0_i32_0 = arith.constant 0 : i32
    return %arg0, %c0_i32 : i32, i32
  }
  func.func @transform_1(%arg0: i32) -> (i32, i32) {
    %c0_i32 = arith.constant 0 : i32
    %c0_i32_0 = arith.constant 0 : i32
    %c0_i32_1 = arith.constant 0 : i32
    return %c0_i32, %c0_i32_0 : i32, i32
  }
  func.func @transform_2(%arg0: i32) -> (i32, i32) {
    %c0_i32 = arith.constant 0 : i32
    %c0_i32_0 = arith.constant 0 : i32
    %c0_i32_1 = arith.constant 0 : i32
    return %c0_i32, %c0_i32_0 : i32, i32
  }
  func.func @transform_3(%arg0: i32) -> (i32, i32) {
    %c0_i32 = arith.constant 0 : i32
    %c0_i32_0 = arith.constant 0 : i32
    %c0_i32_1 = arith.constant 0 : i32
    return %c0_i32, %c0_i32_0 : i32, i32
  }
  func.func @transform_4(%arg0: i32) -> (i32, i32) {
    %c0_i32 = arith.constant 0 : i32
    %c0_i32_0 = arith.constant 0 : i32
    return %arg0, %c0_i32 : i32, i32
  }
  func.func @transform_5(%arg0: i32) -> (i32, i32) {
    %c0_i32 = arith.constant 0 : i32
    %c0_i32_0 = arith.constant 0 : i32
    return %arg0, %c0_i32 : i32, i32
  }
}

</mosaic_0001>

<llo_original>
// kernel: tpu_custom_call.1
$region0: #{tpu_custom_call.1}
  #allocation0 [shape = 'u32[]', space=smem, size = 0x4, offset = 0x4, fixed_abs, tag = 'smem constant byte address 0x4 - core index']
  #allocation1 [shape = 'u32[144,128]{1,0:T(1,128)}', space=vmem, size = 0x12000, scoped, tag = 'internal scratch']
  %s0 = inlined_call_operand.hbm [shape: bf16[4,16], index: 0, kind: input, shape index: {}]
  %s1 = inlined_call_operand.hbm [shape: bf16[16,128], index: 1, kind: input, shape index: {}]
  %s2 = inlined_call_operand.hbm [shape: bf16[128,128], index: 2, kind: input, shape index: {}]
  %s3 = inlined_call_operand.vmem [shape: f32[4,128], index: 3, kind: input, shape index: {}]
  %s4 = inlined_call_operand.hbm [shape: f32[4,64], index: 4, kind: output, shape index: {0}]
  %s5 = inlined_call_operand.vmem [shape: f32[4,1], index: 5, kind: output, shape index: {1}]
  %6 = xla_tuple %s4, %s5
  %s7 = sld [smem:[#allocation0]]
  $region76: #{tpu_custom_call.1} parent=0
    _
  %s9 = ssub.s32 1, %s7
  %s10 = scalar_select 0, %s9, %s7
  $region1: #{tpu_custom_call.1} parent=0
    #allocation2 [shape = 'u8[2048]{0}', space=vmem, size = 0x800, scoped, tag = 'input window, operand 0, single buffered']
    #allocation3 [shape = 's32[1]{0}', space=sflag, size = 0x4, scoped, tag = 'scoped memory for tpu_custom_call.1']
    #allocation4 [shape = 's32[1]{0}', space=sflag, size = 0x4, scoped, tag = 'scoped memory for tpu_custom_call.1']
    #allocation5 [shape = 'u8[4096]{0}', space=vmem, size = 0x1000, scoped, tag = 'input window, operand 1, single buffered']
    #allocation6 [shape = 's32[1]{0}', space=sflag, size = 0x4, scoped, tag = 'scoped memory for tpu_custom_call.1']
    #allocation7 [shape = 'u8[32768]{0}', space=vmem, size = 0x8000, scoped, tag = 'input window, operand 2, single buffered']
    #allocation8 [shape = 'u8[4096]{0}', space=vmem, size = 0x1000, scoped, tag = 'output window, operand 0, single buffered']
    #allocation9 [shape = 'u8[4096]{0}', space=vmem, size = 0x1000, scoped, tag = 'output window, operand 1, single buffered']
    %11 = vsyncpa [#allocation3], 0
    %12 = vsyncpa [#allocation6], 0
    %13 = vsyncpa [#allocation4], 0
    // Predicated region
    $region2: #{tpu_custom_call.1} parent=1 // pred_check
      _
    $region3: #{tpu_custom_call.1} parent=1 // pred_check_branch
      %15 = sbr.rel (0) target = $region5
    $region4: #{tpu_custom_call.1} parent=1 // pred_region
      %s17 = ssub.s32 64, 32
      %18 = vsyncadd [#allocation3], %s17
      %s19 = sshll.u32 [#allocation2], 4
      %s20 = int_to_ptr.vmem [resolvable:$true] %s19
      %25 = dma.hbm_to_vmem [thread:$0]  %s0, 32, %s20, [#allocation3], 32, 32, 2
    $region5: #{tpu_custom_call.1} parent=1 // pred_fallthru
      _
    // Predicated region
    $region6: #{tpu_custom_call.1} parent=1 // pred_check
      _
    $region7: #{tpu_custom_call.1} parent=1 // pred_check_branch
      %27 = sbr.rel (0) target = $region9
    $region8: #{tpu_custom_call.1} parent=1 // pred_region
      %s29 = ssub.s32 128, 128
      %30 = vsyncadd [#allocation6], %s29
      %s31 = sshll.u32 [#allocation5], 4
      %s32 = int_to_ptr.vmem [resolvable:$true] %s31
      %37 = dma.hbm_to_vmem [thread:$0]  %s1, 128, %s32, [#allocation6], 64, 64, 4
    $region9: #{tpu_custom_call.1} parent=1 // pred_fallthru
      _
    // Predicated region
    $region10: #{tpu_custom_call.1} parent=1 // pred_check
      _
    $region11: #{tpu_custom_call.1} parent=1 // pred_check_branch
      %39 = sbr.rel (0) target = $region13
    $region12: #{tpu_custom_call.1} parent=1 // pred_region
      %s41 = ssub.s32 1024, 1024
      %42 = vsyncadd [#allocation6], %s41
      %s43 = sshll.u32 [#allocation7], 4
      %s44 = int_to_ptr.vmem [resolvable:$true] %s43
      %49 = dma.hbm_to_vmem [thread:$0]  %s2, 1024, %s44, [#allocation6], 64, 64, 4
    $region13: #{tpu_custom_call.1} parent=1 // pred_fallthru
      _
    // Predicated region
    $region14: #{tpu_custom_call.1} parent=1 // pred_check
      _
    $region15: #{tpu_custom_call.1} parent=1 // pred_check_branch
      %51 = sbr.rel (0) target = $region17
    $region16: #{tpu_custom_call.1} parent=1 // pred_region
      _
    $region17: #{tpu_custom_call.1} parent=1 // pred_fallthru
      _
    // Predicated region
    $region18: #{tpu_custom_call.1} parent=1 // pred_check
      _
    $region19: #{tpu_custom_call.1} parent=1 // pred_check_branch
      %53 = sbr.rel (0) target = $region21
    $region20: #{tpu_custom_call.1} parent=1 // pred_region
      %54 = dma.done [#allocation3], 64
    $region21: #{tpu_custom_call.1} parent=1 // pred_fallthru
      _
    // Predicated region
    $region22: #{tpu_custom_call.1} parent=1 // pred_check
      _
    $region23: #{tpu_custom_call.1} parent=1 // pred_check_branch
      %56 = sbr.rel (0) target = $region25
    $region24: #{tpu_custom_call.1} parent=1 // pred_region
      %57 = dma.done [#allocation6], 128
    $region25: #{tpu_custom_call.1} parent=1 // pred_fallthru
      _
    // Predicated region
    $region26: #{tpu_custom_call.1} parent=1 // pred_check
      _
    $region27: #{tpu_custom_call.1} parent=1 // pred_check_branch
      %59 = sbr.rel (0) target = $region29
    $region28: #{tpu_custom_call.1} parent=1 // pred_region
      %60 = dma.done [#allocation6], 1024
    $region29: #{tpu_custom_call.1} parent=1 // pred_fallthru
      _
    %v62 = vld [vmem:[%s3] sm:$0x1]
    %v63 = vld [vmem:[%s3 + $0x1] sm:$0x1]
    %v64 = vld [vmem:[%s3 + $0x2] sm:$0x1]
    %v65 = vld [vmem:[%s3 + $0x3] sm:$0x1]
    %v66 = vld [vmem:[#allocation2] sm:$0x3]
    %v67 = vld [vmem:[#allocation2 + $0x2] sm:$0x3]
    %v68 = vld [vmem:[#allocation5] sm:$0xf]
    %v69 = vld [vmem:[#allocation5 + $0x4] sm:$0xf]
    %v70 = vlaneseq
    %v71 = vshrl.u32 %v70, 7
    %v72 = vsub.s32 0, %v71
    %v73 = vrot.slane %v62, %v72
    %v76 = vcombine.low %v66, %v67
    %v78 = vunpack.c.l.s4 1983009808
    %v79 = vunpack.c.0.s8 %v78
    %v80 = vlaneseq
    %v81 = vshrl.u32 %v80, 7
    %v82 = vsub.s32 %v79, %v81
    %v83 = vrot.slane %v76, %v82
    %v86 = vunpack.c.l.b16 %v68
    %v87 = vunpack.c.l.b16 %v69
    %v88 = vpack.c.b16 %v87, %v86
    %vm90 = vcmask 130048
    %v92 = vsel %vm90, %v83, 0
    %94 = vmatprep.subr.bf16.mxu0 0
    %95 = vmatpush1.bf16.msra.mxu0 %v88
    %96 = vmatprep.subr.bf16.mxu0 0
    %97 = vmatpush1.bf16.msra.mxu0 0
    %98 = vmatprep.subr.bf16.mxu0 0
    %99 = vmatpush1.bf16.msra.mxu0 0
    %100 = vmatprep.subr.bf16.mxu0 0
    %101 = vmatpush1.bf16.msra.mxu0 0
    %102 = vmatprep.subr.bf16.mxu0 0
    %103 = vmatpush1.bf16.msra.mxu0 0
    %104 = vmatprep.subr.bf16.mxu0 0
    %105 = vmatpush1.bf16.msra.mxu0 0
    %106 = vmatprep.subr.bf16.mxu0 0
    %107 = vmatpush1.bf16.msra.mxu0 0
    %108 = vmatprep.subr.bf16.mxu0 0
    %109 = vmatpush1.bf16.msra.mxu0 0
    %110 = vmatprep.subr.bf16.mxu0 0
    %111 = vmatpush1.bf16.msra.mxu0 0
    %112 = vmatprep.subr.bf16.mxu0 0
    %113 = vmatpush1.bf16.msra.mxu0 0
    %114 = vmatprep.subr.bf16.mxu0 0
    %115 = vmatpush1.bf16.msra.mxu0 0
    %116 = vmatprep.subr.bf16.mxu0 0
    %117 = vmatpush1.bf16.msra.mxu0 0
    %118 = vmatprep.subr.bf16.mxu0 0
    %119 = vmatpush1.bf16.msra.mxu0 0
    %120 = vmatprep.subr.bf16.mxu0 0
    %121 = vmatpush1.bf16.msra.mxu0 0
    %122 = vmatprep.subr.bf16.mxu0 0
    %123 = vmatpush1.bf16.msra.mxu0 0
    %124 = vmatprep.subr.bf16.mxu0 0
    %125 = vmatpush1.bf16.msra.mxu0 0
    %126 = vmatprep.mubr.bf16.mxu0 0
    %127 = vmatmul.mubr.bf16.gmra.mrb[0].mxu0 %v92
    %v128 = vpop.f32.mrb[0].mxu0
    %v129 = vadd.f32 %v73, %v128
    %v130 = vpop.f32.mrb[0].mxu0
    %v131 = vpop.f32.mrb[0].mxu0
    %v132 = vpop.f32.mrb[0].mxu0
    %133 = vdwg.mxu0
    %v134 = vmax.f32 %v129, 0.0
    %v135 = vpack.c.bf16 %v134, %v134
    %v136 = vld [vmem:[#allocation7] sm:$0xf]
    %v137 = vld [vmem:[#allocation7 + $0x4] sm:$0xf]
    %v138 = vld [vmem:[#allocation7 + $0x8] sm:$0xf]
    %v139 = vld [vmem:[#allocation7 + $0xc] sm:$0xf]
    %v140 = vld [vmem:[#allocation7 + $0x10] sm:$0xf]
    %v141 = vld [vmem:[#allocation7 + $0x14] sm:$0xf]
    %v142 = vld [vmem:[#allocation7 + $0x18] sm:$0xf]
    %v143 = vld [vmem:[#allocation7 + $0x1c] sm:$0xf]
    %v144 = vld [vmem:[#allocation7 + $0x20] sm:$0xf]
    %v145 = vld [vmem:[#allocation7 + $0x24] sm:$0xf]
    %v146 = vld [vmem:[#allocation7 + $0x28] sm:$0xf]
    %v147 = vld [vmem:[#allocation7 + $0x2c] sm:$0xf]
    %v148 = vld [vmem:[#allocation7 + $0x30] sm:$0xf]
    %v149 = vld [vmem:[#allocation7 + $0x34] sm:$0xf]
    %v150 = vld [vmem:[#allocation7 + $0x38] sm:$0xf]
    %v151 = vld [vmem:[#allocation7 + $0x3c] sm:$0xf]
    %v152 = vlaneseq
    %v153 = vshrl.u32 %v152, 7
    %v154 = vsub.s32 0, %v153
    %v155 = vrot.slane %v63, %v154
    %v172 = vunpack.c.l.b16 %v136
    %v173 = vunpack.c.l.b16 %v137
    %v174 = vunpack.c.l.b16 %v138
    %v175 = vunpack.c.l.b16 %v139
    %v176 = vunpack.c.l.b16 %v140
    %v177 = vunpack.c.l.b16 %v141
    %v178 = vunpack.c.l.b16 %v142
    %v179 = vunpack.c.l.b16 %v143
    %v180 = vunpack.c.l.b16 %v144
    %v181 = vunpack.c.l.b16 %v145
    %v182 = vunpack.c.l.b16 %v146
    %v183 = vunpack.c.l.b16 %v147
    %v184 = vunpack.c.l.b16 %v148
    %v185 = vunpack.c.l.b16 %v149
    %v186 = vunpack.c.l.b16 %v150
    %v187 = vunpack.c.l.b16 %v151
    %v188 = vpack.c.b16 %v173, %v172
    %v189 = vpack.c.b16 %v175, %v174
    %v190 = vpack.c.b16 %v177, %v176
    %v191 = vpack.c.b16 %v179, %v178
    %v192 = vpack.c.b16 %v181, %v180
    %v193 = vpack.c.b16 %v183, %v182
    %v194 = vpack.c.b16 %v185, %v184
    %v195 = vpack.c.b16 %v187, %v186
    %204 = vmatprep.subr.bf16.mxu0 0
    %205 = vmatpush1.bf16.msra.mxu0 %v188
    %206 = vmatprep.subr.bf16.mxu0 0
    %207 = vmatpush1.bf16.msra.mxu0 %v189
    %208 = vmatprep.subr.bf16.mxu0 0
    %209 = vmatpush1.bf16.msra.mxu0 %v190
    %210 = vmatprep.subr.bf16.mxu0 0
    %211 = vmatpush1.bf16.msra.mxu0 %v191
    %212 = vmatprep.subr.bf16.mxu0 0
    %213 = vmatpush1.bf16.msra.mxu0 %v192
    %214 = vmatprep.subr.bf16.mxu0 0
    %215 = vmatpush1.bf16.msra.mxu0 %v193
    %216 = vmatprep.subr.bf16.mxu0 0
    %217 = vmatpush1.bf16.msra.mxu0 %v194
    %218 = vmatprep.subr.bf16.mxu0 0
    %219 = vmatpush1.bf16.msra.mxu0 %v195
    %220 = vmatprep.subr.bf16.mxu0 0
    %221 = vmatpush1.bf16.msra.mxu0 0
    %222 = vmatprep.subr.bf16.mxu0 0
    %223 = vmatpush1.bf16.msra.mxu0 0
    %224 = vmatprep.subr.bf16.mxu0 0
    %225 = vmatpush1.bf16.msra.mxu0 0
    %226 = vmatprep.subr.bf16.mxu0 0
    %227 = vmatpush1.bf16.msra.mxu0 0
    %228 = vmatprep.subr.bf16.mxu0 0
    %229 = vmatpush1.bf16.msra.mxu0 0
    %230 = vmatprep.subr.bf16.mxu0 0
    %231 = vmatpush1.bf16.msra.mxu0 0
    %232 = vmatprep.subr.bf16.mxu0 0
    %233 = vmatpush1.bf16.msra.mxu0 0
    %234 = vmatprep.subr.bf16.mxu0 0
    %235 = vmatpush1.bf16.msra.mxu0 0
    %236 = vmatprep.mubr.bf16.mxu0 0
    %237 = vmatmul.mubr.bf16.gmra.mrb[0].mxu0 %v135
    %v238 = vpop.f32.mrb[0].mxu0
    %v239 = vadd.f32 %v155, %v238
    %v240 = vpop.f32.mrb[0].mxu0
    %v241 = vpop.f32.mrb[0].mxu0
    %v242 = vpop.f32.mrb[0].mxu0
    %243 = vdwg.mxu0
    %v244 = vmax.f32 %v239, 0.0
    %v245 = vlaneseq
    %v246 = vshrl.u32 %v245, 7
    %v247 = vsub.s32 0, %v246
    %v248 = vrot.slane %v64, %v247
    %v249 = vmul.f32 %v244, %v248
    %250 = vadd.xlane.f32.xlu0 %v249
    %v251 = vpop.xlane.xlu0 %250
    %v252 = vlaneseq
    %v253 = vshrl.u32 %v252, 7
    %v254 = vsub.s32 0, %v253
    %v255 = vrot.slane %v65, %v254
    %v256 = vadd.f32 %v251, %v255
    %vm257 = vcmask 7168
    %258 = vst.msk [vmem:[#allocation9] sm:$0xff] %vm257, %v256
    %vm259 = vcmask 523264
    %260 = vst.msk [vmem:[#allocation8] sm:$0xff] %vm259, %v244
    // Predicated region
    $region30: #{tpu_custom_call.1} parent=1 // pred_check
      _
    $region31: #{tpu_custom_call.1} parent=1 // pred_check_branch
      %262 = sbr.rel (0) target = $region33
    $region32: #{tpu_custom_call.1} parent=1 // pred_region
      %s264 = ssub.s32 128, 64
      %265 = vsyncadd [#allocation4], %s264
      %s266 = sshll.u32 [#allocation8], 4
      %s267 = int_to_ptr.vmem [resolvable:$true] %s266
      %272 = dma.vmem_to_hbm [thread:$0]  %s267, 64, %s4, [#allocation4], 64, 64, 4
    $region33: #{tpu_custom_call.1} parent=1 // pred_fallthru
      _
    // Predicated region
    $region34: #{tpu_custom_call.1} parent=1 // pred_check
      _
    $region35: #{tpu_custom_call.1} parent=1 // pred_check_branch
      %274 = sbr.rel (0) target = $region37
    $region36: #{tpu_custom_call.1} parent=1 // pred_region
      // Predicated region
      $region38: #{tpu_custom_call.1} parent=36 // pred_check
        _
      $region39: #{tpu_custom_call.1} parent=36 // pred_check_branch
        %276 = sbr.rel (0) target = $region41
      $region40: #{tpu_custom_call.1} parent=36 // pred_region
        // Predicated region
        $region42: #{tpu_custom_call.1} parent=40 // pred_check
          _
        $region43: #{tpu_custom_call.1} parent=40 // pred_check_branch
          %278 = sbr.rel target = $region45
        $region44: #{tpu_custom_call.1} parent=40 // pred_region
          // Predicated region
          $region57: #{tpu_custom_call.1} parent=44 // pred_check
            _
          $region58: #{tpu_custom_call.1} parent=44 // pred_check_branch
            %293 = sbr.rel (0) target = $region60
          $region59: #{tpu_custom_call.1} parent=44 // pred_region
            loop: start=0, step=1, limit=1
            $region61: #{tpu_custom_call.1} parent=59 // loop_pre_header
              _
            $region62: #{tpu_custom_call.1} parent=59 // loop_header
              %s296 = sphi 0, %s300
              %p297 = scmp.ge.s32.totalorder %s296, 1
              %s301 = sphi [#allocation9], [#allocation9]
              %s302 = sphi %s5, %s5
            $region63: #{tpu_custom_call.1} parent=59 // loop_header_branch
              %299 = sbr.rel (%p297) target = $region67
            $region64: #{tpu_custom_call.1} parent=59 // loop_body
              %v303 = vld [vmem:[%s301] sm:$0xf]
              %304 = vst [vmem:[%s302] sm:$0xf] %v303
            $region65: #{tpu_custom_call.1} parent=59 // loop_footer
              %s300 = sadd.s32 1, %s296
            $region66: #{tpu_custom_call.1} parent=59 // loop_footer_branch
              %295 = sbr.rel target = $region62
            $region67: #{tpu_custom_call.1} parent=59 // loop_exit
              _
          $region60: #{tpu_custom_call.1} parent=44 // pred_fallthru
            _
        $region45: #{tpu_custom_call.1} parent=40 // pred_fallthru
          _
        // Predicated region
        $region46: #{tpu_custom_call.1} parent=40 // pred_check
          _
        $region47: #{tpu_custom_call.1} parent=40 // pred_check_branch
          %280 = sbr.rel (0) target = $region49
        $region48: #{tpu_custom_call.1} parent=40 // pred_region
          loop: start=0, step=1, limit=1
          $region50: #{tpu_custom_call.1} parent=48 // loop_pre_header
            _
          $region51: #{tpu_custom_call.1} parent=48 // loop_header
            %s283 = sphi 0, %s287
            %p284 = scmp.ge.s32.totalorder %s283, 1
            %s288 = sphi [#allocation9], [#allocation9]
            %s289 = sphi %s5, %s5
          $region52: #{tpu_custom_call.1} parent=48 // loop_header_branch
            %286 = sbr.rel (%p284) target = $region56
          $region53: #{tpu_custom_call.1} parent=48 // loop_body
            %v290 = vld [vmem:[%s288] sm:$0xf]
            %291 = vst [vmem:[%s289] sm:$0xf] %v290
          $region54: #{tpu_custom_call.1} parent=48 // loop_footer
            %s287 = sadd.s32 1, %s283
          $region55: #{tpu_custom_call.1} parent=48 // loop_footer_branch
            %282 = sbr.rel target = $region51
          $region56: #{tpu_custom_call.1} parent=48 // loop_exit
            _
        $region49: #{tpu_custom_call.1} parent=40 // pred_fallthru
          _
      $region41: #{tpu_custom_call.1} parent=36 // pred_fallthru
        _
      %305 = vnop
    $region37: #{tpu_custom_call.1} parent=1 // pred_fallthru
      _
    // Predicated region
    $region68: #{tpu_custom_call.1} parent=1 // pred_check
      _
    $region69: #{tpu_custom_call.1} parent=1 // pred_check_branch
      %307 = sbr.rel (0) target = $region71
    $region70: #{tpu_custom_call.1} parent=1 // pred_region
      %308 = dma.done [#allocation4], 128
    $region71: #{tpu_custom_call.1} parent=1 // pred_fallthru
      _
    // Predicated region
    $region72: #{tpu_custom_call.1} parent=1 // pred_check
      _
    $region73: #{tpu_custom_call.1} parent=1 // pred_check_branch
      %310 = sbr.rel (0) target = $region75
    $region74: #{tpu_custom_call.1} parent=1 // pred_region
      _
    $region75: #{tpu_custom_call.1} parent=1 // pred_fallthru
      _
    %311 = vsyncpa [#allocation3], 1
    %312 = vsyncpa [#allocation6], 1
    %313 = vsyncpa [#allocation4], 1

</llo_original>
